<compile_context>
chip_gen: v7x
topology: tpu7x:2x2x1
jax: 0.10.0
libtpu: 0.0.40
codegen_flags: <defaults>
</compile_context>

<pallas_src>
from functools import partial

import jax
import jax.numpy as jnp
from jax import lax
from jax.experimental import pallas as pl
from jax.experimental.pallas import tpu as pltpu


# ---------------------------------------------------------------------------
# Pallas kernel: one tile of  neg[s] = (Q @ memory[s, tile]^T) / T
# ---------------------------------------------------------------------------
def _moco_neg_kernel(q_ref, mem_ref, neg_ref, *, inv_T):
    # Contract the feature (last) dims of both operands: the queue tile is consumed
    # as a transposed RHS by the MXU directly (no in-kernel transpose).
    neg_ref[...] = (
        lax.dot_general(
            q_ref[...], mem_ref[...],
            dimension_numbers=(((1,), (1,)), ((), ())),
            preferred_element_type=jnp.float32,
        ) * inv_T
    )


def _choose_tk(K, n_dim, m, *, queue_itemsize=2, out_itemsize=4,
               max_tk=8192, vmem_budget_bytes=12 * 1024 * 1024):
    """Largest 128-multiple divisor of K whose double-buffered queue tile + output
    tile fits a conservative VMEM budget (works for v5e/v6e 128 MiB and v7x 64 MiB)."""
    per_row_bytes = queue_itemsize * n_dim + out_itemsize * m
    cap = max(128, vmem_budget_bytes // (2 * per_row_bytes))   # 2x = double buffer
    cap = min(cap, max_tk, K)
    if K % 128 == 0:
        best = 128                      # 128 always divides K here
        t = 256
        while t <= cap:
            if K % t == 0:
                best = t
            t += 128
        return best
    # Small / non-128-aligned K: single block spanning the whole queue axis
    # (block_shape equal to the full array dim is always legal).
    footprint = 2 * K * per_row_bytes
    if footprint > 24 * 1024 * 1024:
        # TODO(synk): pad K to a multiple of 128 and mask the tail instead of failing.
        raise ValueError(
            f"K={K} is not a multiple of 128 and too large for a single VMEM tile")
    return K


def compute_neg_fused(q, memory, T, tk=None):
    """neg[s] = (q @ memory[s]^T) / T for s in {0, 1}, streaming each queue once.

    Args:
      q:      (M, n_dim) bf16 query features (q and q_jig stacked).
      memory: (2, K, n_dim) bf16 stacked memory buffers.
    Returns:
      (2, M, K) float32 scaled negative logits.
    """
    M, n_dim = q.shape
    S, K, n_dim_m = memory.shape
    assert n_dim == n_dim_m and S == 2
    if tk is None:
        tk = _choose_tk(K, n_dim, M,
                        queue_itemsize=memory.dtype.itemsize, out_itemsize=4)
    assert K % tk == 0, "queue size must be divisible by the tile size"

    return pl.pallas_call(
        partial(_moco_neg_kernel, inv_T=1.0 / T),
        out_shape=jax.ShapeDtypeStruct((S, M, K), jnp.float32),
        grid_spec=pltpu.PrefetchScalarGridSpec(
            num_scalar_prefetch=0,
            grid=(S, K // tk),
            in_specs=[
                # Q stays resident in VMEM across the whole grid.
                pl.BlockSpec((M, n_dim), lambda s, j: (0, 0)),
                # One bf16 queue tile per step; leading memory-select dim squeezed.
                pl.BlockSpec((None, tk, n_dim), lambda s, j: (s, j, 0)),
            ],
            out_specs=pl.BlockSpec((None, M, tk), lambda s, j: (s, 0, j)),
        ),
        compiler_params=pltpu.CompilerParams(
            dimension_semantics=("parallel", "parallel"),   # all tiles independent
            vmem_limit_bytes=32 * 1024 * 1024,
        ),
        cost_estimate=pl.CostEstimate(
            flops=2 * S * M * n_dim * K,
            transcendentals=0,
            bytes_accessed=(memory.dtype.itemsize * S * K * n_dim
                            + q.dtype.itemsize * M * n_dim
                            + 4 * S * M * K),
        ),
    )(q, memory)


# ---------------------------------------------------------------------------
# In-place queue update (index_copy_ semantics) with buffer donation.
# Both memories are updated in one call; contiguous write in the common case.
# ---------------------------------------------------------------------------
@partial(jax.jit, donate_argnums=(0,))
def _update_memory_contiguous(memory, k1, k2, start):
    upd = jnp.stack([k1, k2]).astype(memory.dtype)          # (2, num_neg, n_dim)
    zero = jnp.int32(0)
    return lax.dynamic_update_slice(memory, upd, (zero, start.astype(jnp.int32), zero))


@partial(jax.jit, donate_argnums=(0,))
def _update_memory_wrapped(memory, k1, k2, start):
    # Rare ring-wraparound path: scatter on the mod-K row indices.
    K = memory.shape[1]
    num = k1.shape[0]
    ids = jnp.mod(jnp.arange(num, dtype=jnp.int32) + start, K)
    upd = jnp.stack([k1, k2]).astype(memory.dtype)
    return memory.at[:, ids, :].set(upd)


# ---------------------------------------------------------------------------
# RGBMoCoJig module (forward semantics of the PyTorch class)
# ---------------------------------------------------------------------------
def _l2_normalize(x, axis=1, eps=1e-12):
    # F.normalize(x) with default p=2, dim=1
    norm = jnp.sqrt(jnp.sum(x * x, axis=axis, keepdims=True))
    return x / jnp.maximum(norm, eps)


class RGBMoCoJigPallas:
    def __init__(self, n_dim, K=65536, T=0.07, seed=0):
        self.K = K
        self.T = T
        self.n_dim = n_dim
        # TODO(synk): self.index is Python-side state; thread it as a traced array
        # if the full forward is ever wrapped in jax.jit.
        self.index = 0
        key = jax.random.PRNGKey(seed)
        k1, k2 = jax.random.split(key)
        mem1 = _l2_normalize(jax.random.normal(k1, (K, n_dim), dtype=jnp.float32))
        mem2 = _l2_normalize(jax.random.normal(k2, (K, n_dim), dtype=jnp.float32))
        # Stacked bf16 memory: halves HBM read traffic of the (HBM-bound) neg kernel.
        self.memory = jnp.stack([mem1, mem2]).astype(jnp.bfloat16)   # (2, K, n_dim)

    @property
    def memory_1(self):
        return self.memory[0]

    @property
    def memory_2(self):
        return self.memory[1]

    def _update_pointer(self, bsz):
        self.index = (self.index + bsz) % self.K

    def _update_memory(self, all_k, all_k_jig):
        num_neg = all_k.shape[0]
        start = jnp.int32(self.index)
        if self.index + num_neg <= self.K:
            self.memory = _update_memory_contiguous(self.memory, all_k, all_k_jig, start)
        else:
            self.memory = _update_memory_wrapped(self.memory, all_k, all_k_jig, start)
        self._update_pointer(num_neg)

    def forward(self, q, k, q_jig=None, k_jig=None, all_k=None, all_k_jig=None):
        bsz = q.shape[0]
        inv_T = 1.0 / self.T

        # Stack q / q_jig so each queue is streamed from HBM only once.
        Q = jnp.concatenate([q, q_jig], axis=0) if q_jig is not None else q
        neg = compute_neg_fused(Q.astype(jnp.bfloat16), self.memory, self.T)  # (2, M, K)

        # Positive logits (tiny) in plain JAX f32, already scaled by 1/T.
        pos_qk = jnp.sum(q * k, axis=1, keepdims=True) * inv_T
        pos_qkj = jnp.sum(q * k_jig, axis=1, keepdims=True) * inv_T
        # TODO(synk): a real training loop should pass pos/neg separately to the loss
        # (logsumexp over both) to avoid materializing these concatenations.
        logits = jnp.concatenate([pos_qk, neg[0, :bsz]], axis=1)
        logits2 = jnp.concatenate([pos_qkj, neg[1, :bsz]], axis=1)
        if q_jig is not None:
            pos_jk = jnp.sum(q_jig * k, axis=1, keepdims=True) * inv_T
            pos_jkj = jnp.sum(q_jig * k_jig, axis=1, keepdims=True) * inv_T
            logits1_jig = jnp.concatenate([pos_jk, neg[0, bsz:]], axis=1)
            logits2_jig = jnp.concatenate([pos_jkj, neg[1, bsz:]], axis=1)

        # TODO(synk): PyTorch labels are int64 (torch.long); JAX x64 is off -> int32.
        labels = jnp.zeros((bsz,), dtype=jnp.int32)

        all_k = all_k if all_k is not None else k
        all_k_jig = all_k_jig if all_k_jig is not None else k_jig
        self._update_memory(all_k, all_k_jig)

        # TODO(synk): bsz == 1 keeps shape (1, 1+K); PyTorch's .squeeze() would drop it.
        if q_jig is not None:
            return (logits, logits2, logits1_jig, logits2_jig, labels)
        return (logits, labels)


# ---------------------------------------------------------------------------
# Pure-JAX reference for sanity checking (uses the same bf16-rounded operands)
# ---------------------------------------------------------------------------
def _compute_logit_ref(q, k, mem_f32, T):
    pos = jnp.sum(q * k, axis=1, keepdims=True)
    q_b = q.astype(jnp.bfloat16).astype(jnp.float32)
    neg = jnp.dot(q_b, mem_f32.T)
    return jnp.concatenate([pos, neg], axis=1) / T


if __name__ == "__main__":
    # small shapes: bsz=8 features of dim 128, queue of K=512 entries
    bsz, n_dim, K = 8, 128, 512
    model = RGBMoCoJigPallas(n_dim=n_dim, K=K, T=0.07, seed=0)

    key = jax.random.PRNGKey(0)
    kq, kk, kqj, kkj = jax.random.split(key, 4)
    q = _l2_normalize(jax.random.normal(kq, (bsz, n_dim), dtype=jnp.float32))
    k = _l2_normalize(jax.random.normal(kk, (bsz, n_dim), dtype=jnp.float32))
    q_jig = _l2_normalize(jax.random.normal(kqj, (bsz, n_dim), dtype=jnp.float32))
    k_jig = _l2_normalize(jax.random.normal(kkj, (bsz, n_dim), dtype=jnp.float32))

    # Compute references BEFORE forward (the memory buffer is donated/updated in-place).
    mem1_f32 = model.memory[0].astype(jnp.float32)
    mem2_f32 = model.memory[1].astype(jnp.float32)
    ref1 = _compute_logit_ref(q, k, mem1_f32, model.T)
    ref2 = _compute_logit_ref(q, k_jig, mem2_f32, model.T)
    ref3 = _compute_logit_ref(q_jig, k, mem1_f32, model.T)
    ref4 = _compute_logit_ref(q_jig, k_jig, mem2_f32, model.T)
    jax.block_until_ready((ref1, ref2, ref3, ref4))

    out = model.forward(q, k, q_jig=q_jig, k_jig=k_jig)
    out = jax.block_until_ready(out)
    logits, logits2, logits1_jig, logits2_jig, labels = out

    # shape checks
    assert logits.shape == (bsz, 1 + K)
    assert logits2.shape == (bsz, 1 + K)
    assert logits1_jig.shape == (bsz, 1 + K)
    assert logits2_jig.shape == (bsz, 1 + K)
    assert labels.shape == (bsz,)

    # numerical checks (bf16 memories -> looser tolerance than the old f32 check)
    tol = dict(atol=5e-3, rtol=5e-3)
    assert jnp.allclose(logits, ref1, **tol)
    assert jnp.allclose(logits2, ref2, **tol)
    assert jnp.allclose(logits1_jig, ref3, **tol)
    assert jnp.allclose(logits2_jig, ref4, **tol)

    # memory update semantics (index_copy_ at [index, index+bsz) mod K)
    assert jnp.array_equal(model.memory_1[:bsz], k.astype(jnp.bfloat16))
    assert jnp.array_equal(model.memory_2[:bsz], k_jig.astype(jnp.bfloat16))
    assert model.index == bsz

    print("KERNEL_OK")
</pallas_src>

<mosaic_0001>
module attributes {stable_mosaic.version = 11 : i64} {
  func.func @_moco_neg_kernel(%arg0: i32, %arg1: i32, %arg2: memref<16x128xbf16, #tpu.memory_space<vmem>>, %arg3: memref<1x512x128xbf16, #tpu.memory_space<vmem>>, %arg4: memref<1x16x512xf32, #tpu.memory_space<vmem>>) attributes {dimension_semantics = [#tpu.dimension_semantics<parallel>, #tpu.dimension_semantics<parallel>], iteration_bounds = array<i64: 2, 1>, scalar_prefetch = 0 : i64, scratch_operands = 0 : i64, tpu.core_type = #tpu.core_type<tc>, window_params = [{pipeline_mode = #tpu.pipeline_mode<synchronous>, transform_indices = @transform_0, window_bounds = array<i64: 16, 128>}, {transform_indices = @transform_1, window_bounds = array<i64: 1, 512, 128>}, {transform_indices = @transform_2, window_bounds = array<i64: 1, 16, 512>}]} {
    %c0 = arith.constant 0 : index
    %c0_0 = arith.constant 0 : index
    %0 = vector.load %arg2[%c0, %c0_0] : memref<16x128xbf16, #tpu.memory_space<vmem>>, vector<16x128xbf16>
    %c0_1 = arith.constant 0 : index
    %c0_2 = arith.constant 0 : index
    %c0_3 = arith.constant 0 : index
    %1 = vector.load %arg3[%c0_1, %c0_2, %c0_3] : memref<1x512x128xbf16, #tpu.memory_space<vmem>>, vector<1x512x128xbf16>
    %2 = vector.shape_cast %1 : vector<1x512x128xbf16> to vector<512x128xbf16>
    %cst = arith.constant dense<0.000000e+00> : vector<16x512xf32>
    %3 = tpu.matmul %0, %2, %cst {dimension_numbers = #tpu.dot_dimension_numbers<[1], [1], [0], [0], [0, 0, 1, 0], [], []>} : vector<16x128xbf16>, vector<512x128xbf16>, vector<16x512xf32> -> vector<16x512xf32>
    %cst_4 = arith.constant 14.2857141 : f32
    %4 = vector.broadcast %cst_4 : f32 to vector<16x512xf32>
    %5 = arith.mulf %3, %4 : vector<16x512xf32>
    %c0_5 = arith.constant 0 : index
    %c0_6 = arith.constant 0 : index
    %c0_7 = arith.constant 0 : index
    %6 = vector.load %arg4[%c0_5, %c0_6, %c0_7] : memref<1x16x512xf32, #tpu.memory_space<vmem>>, vector<1x16x512xf32>
    %7 = vector.shape_cast %6 : vector<1x16x512xf32> to vector<16x512xf32>
    %8 = vector.shape_cast %5 : vector<16x512xf32> to vector<1x16x512xf32>
    tpu.vector_store %arg4[%c0_5, %c0_6, %c0_7], %8 {strides = array<i32>} : memref<1x16x512xf32, #tpu.memory_space<vmem>>, vector<1x16x512xf32>,
    return
  }
  func.func @transform_0(%arg0: i32, %arg1: i32) -> (i32, i32) {
    %c0_i32 = arith.constant 0 : i32
    %c0_i32_0 = arith.constant 0 : i32
    %c0_i32_1 = arith.constant 0 : i32
    return %c0_i32, %c0_i32_0 : i32, i32
  }
  func.func @transform_1(%arg0: i32, %arg1: i32) -> (i32, i32, i32) {
    %c0_i32 = arith.constant 0 : i32
    %c0_i32_0 = arith.constant 0 : i32
    return %arg0, %arg1, %c0_i32 : i32, i32, i32
  }
  func.func @transform_2(%arg0: i32, %arg1: i32) -> (i32, i32, i32) {
    %c0_i32 = arith.constant 0 : i32
    %c0_i32_0 = arith.constant 0 : i32
    return %arg0, %c0_i32, %arg1 : i32, i32, i32
  }
}

</mosaic_0001>

<llo_original>
// kernel: tpu_custom_call.1
$region0: #{tpu_custom_call.1}
  #allocation0 [shape = 'u32[]', space=smem, size = 0x4, offset = 0x4, fixed_abs, tag = 'smem constant byte address 0x4 - core index']
  #allocation1 [shape = 'u32[144,128]{1,0:T(1,128)}', space=vmem, size = 0x12000, scoped, tag = 'internal scratch']
  %s0 = inlined_call_operand.hbm [shape: bf16[16,128], index: 0, kind: input, shape index: {}]
  %s1 = inlined_call_operand.hbm [shape: bf16[2,512,128], index: 1, kind: input, shape index: {}]
  %s2 = inlined_call_operand.hbm [shape: f32[2,16,512], index: 2, kind: output, shape index: {}]
  %s3 = sld [smem:[#allocation0]]
  $region49: #{tpu_custom_call.1} parent=0
    _
  %s5 = ssub.s32 1, %s3
  %s6 = scalar_select 0, %s5, %s3
  $region1: #{tpu_custom_call.1} parent=0
    #allocation2 [shape = 'u8[4096]{0}', space=vmem, size = 0x1000, scoped, tag = 'input window, operand 0, single buffered']
    #allocation3 [shape = 's32[2]{0}', space=sflag, size = 0x8, scoped, tag = 'scoped memory for tpu_custom_call.1']
    #allocation4 [shape = 's32[2]{0}', space=sflag, size = 0x8, scoped, tag = 'scoped memory for tpu_custom_call.1']
    #allocation5 [shape = 'u8[262144]{0}', space=vmem, size = 0x40000, scoped, tag = 'input window, operand 1']
    #allocation6 [shape = 's32[2]{0}', space=sflag, size = 0x8, scoped, tag = 'scoped memory for tpu_custom_call.1']
    #allocation7 [shape = 'u8[65536]{0}', space=vmem, size = 0x10000, scoped, tag = 'output window, operand 0']
    %7 = vsyncpa [#allocation3], 0
    %8 = vsyncpa [#allocation6], 0
    %s9 = scalar_lea.sflag [#allocation6], 1
    %10 = vsyncpa %s9, 0
    %11 = vsyncpa [#allocation4], 0
    %s12 = scalar_lea.sflag [#allocation4], 1
    %13 = vsyncpa %s12, 0
    loop: start=0, step=1, limit=4
    $region2: #{tpu_custom_call.1} parent=1 // loop_pre_header
      _
    $region3: #{tpu_custom_call.1} parent=1 // loop_header
      %s15 = sphi 0, %s19
      %p16 = scmp.ge.s32.totalorder %s15, 4
      %s22 = sphi 0, %s34
      %s23 = sphi 0, %s30
      %s24 = sphi 0, %s22
      %s25 = sphi 0, %s23
      %s26 = sphi 0, %s24
      %s27 = sphi 0, %s25
      %s35 = sphi 0, %s35
      %s37 = sphi 0, %s35
      %s38 = sphi 0, %s37
      %s52 = sphi 0, %s38
      %s60 = sphi 0, %s62
      %s63 = sphi 0, %s60
      %s64 = sphi 0, %s63
      %s80 = sphi 0, %s64
      %s88 = sphi 0, %s90
      %s91 = sphi 0, %s88
      %s92 = sphi 0, %s91
      %s108 = sphi 0, %s92
    $region4: #{tpu_custom_call.1} parent=1 // loop_header_branch
      %18 = sbr.rel (%p16) target = $region8
    $region5: #{tpu_custom_call.1} parent=1 // loop_body
      %s20 = ssub.s32 %s15, 1
      %s21 = ssub.s32 %s15, 2
      %s28 = sadd.s32 1, %s23
      %p29 = scmp.ge.s32.totalorder %s28, 1
      %s30 = scalar_select %p29, 0, %s28
      %s31 = sadd.s32 1, %s22
      %s32 = scalar_select %p29, %s31, %s22
      %p33 = scmp.ge.s32.totalorder %s32, 2
      %s34 = scalar_select %p33, 0, %s32
      %s36 = sadd.s32 %s35, 1
      %p39 = scmp.eq.s32.totalorder %s15, 1
      %p40 = scmp.ne.s32.totalorder %s35, %s37
      %p41 = scmp.eq.s32.totalorder %s15, 0
      %p42 = por %p40, %p41
      %p43 = scmp.ne.s32.totalorder %s35, %s37
      %p44 = scmp.eq.s32.totalorder %s20, 1
      %p45 = por %p43, %p44
      %p46 = scmp.ne.s32.totalorder %s37, %s38
      %p47 = scmp.eq.s32.totalorder %s20, 0
      %p48 = por %p46, %p47
      %p49 = scmp.ne.s32.totalorder %s37, %s38
      %p50 = scmp.eq.s32.totalorder %s21, 1
      %p51 = por %p49, %p50
      %p53 = scmp.ne.s32.totalorder %s38, %s52
      %p54 = scmp.eq.s32.totalorder %s21, 0
      %p55 = por %p53, %p54
      %s56 = ssub.s32 %s22, %s34
      %s57 = ssub.s32 %s23, %s30
      %s58 = sor.u32 %s56, %s57
      %p59 = scmp.eq.s32.totalorder %s58, 0
      %s61 = sadd.s32 %s60, 1
      %s62 = scalar_select %p59, %s60, %s61
      %p65 = pneg %p59
      %p66 = scmp.eq.s32.totalorder %s15, 1
      %p67 = por %p65, %p66
      %p68 = scmp.ne.s32.totalorder %s60, %s63
      %p69 = scmp.eq.s32.totalorder %s15, 0
      %p70 = por %p68, %p69
      %p71 = scmp.ne.s32.totalorder %s60, %s63
      %p72 = scmp.eq.s32.totalorder %s20, 1
      %p73 = por %p71, %p72
      %p74 = scmp.ne.s32.totalorder %s63, %s64
      %p75 = scmp.eq.s32.totalorder %s20, 0
      %p76 = por %p74, %p75
      %p77 = scmp.ne.s32.totalorder %s63, %s64
      %p78 = scmp.eq.s32.totalorder %s21, 1
      %p79 = por %p77, %p78
      %p81 = scmp.ne.s32.totalorder %s64, %s80
      %p82 = scmp.eq.s32.totalorder %s21, 0
      %p83 = por %p81, %p82
      %s84 = ssub.s32 %s22, %s34
      %s85 = ssub.s32 %s23, %s30
      %s86 = sor.u32 %s84, %s85
      %p87 = scmp.eq.s32.totalorder %s86, 0
      %s89 = sadd.s32 %s88, 1
      %s90 = scalar_select %p87, %s88, %s89
      %p93 = pneg %p87
      %p94 = scmp.eq.s32.totalorder %s15, 1
      %p95 = por %p93, %p94
      %p96 = scmp.ne.s32.totalorder %s88, %s91
      %p97 = scmp.eq.s32.totalorder %s15, 0
      %p98 = por %p96, %p97
      %p99 = scmp.ne.s32.totalorder %s88, %s91
      %p100 = scmp.eq.s32.totalorder %s20, 1
      %p101 = por %p99, %p100
      %p102 = scmp.ne.s32.totalorder %s91, %s92
      %p103 = scmp.eq.s32.totalorder %s20, 0
      %p104 = por %p102, %p103
      %p105 = scmp.ne.s32.totalorder %s91, %s92
      %p106 = scmp.eq.s32.totalorder %s21, 1
      %p107 = por %p105, %p106
      %p109 = scmp.ne.s32.totalorder %s92, %s108
      %p110 = scmp.eq.s32.totalorder %s21, 0
      %p111 = por %p109, %p110
      %p112 = scmp.le.s32.totalorder 1, %s15
      %p113 = scmp.lt.s32.totalorder %s15, 3
      %p114 = pnand %p112, %p113
      %p115 = pneg %p114
      // Predicated region
      $region9: #{tpu_custom_call.1} parent=5 // pred_check
        _
      $region10: #{tpu_custom_call.1} parent=5 // pred_check_branch
        %117 = sbr.rel (%p114) target = $region12
      $region11: #{tpu_custom_call.1} parent=5 // pred_region
        %s118 = ssub.s32 %s15, 1
        // Predicated region
        $region13: #{tpu_custom_call.1} parent=11 // pred_check
          %p119 = pneg %p48
        $region14: #{tpu_custom_call.1} parent=11 // pred_check_branch
          %121 = sbr.rel (%p119) target = $region16
        $region15: #{tpu_custom_call.1} parent=11 // pred_region
          %s123 = ssub.s32 128, 128
          %124 = vsyncadd [#allocation3], %s123
          %s125 = sshll.u32 [#allocation2], 4
          %s126 = int_to_ptr.vmem [resolvable:$true] %s125
          %131 = dma.hbm_to_vmem [thread:$0]  %s0, 128, %s126, [#allocation3], 64, 64, 4
        $region16: #{tpu_custom_call.1} parent=11 // pred_fallthru
          _
      $region12: #{tpu_custom_call.1} parent=5 // pred_fallthru
        _
      %p132 = scmp.lt.s32.totalorder %s15, 2
      // Predicated region
      $region17: #{tpu_custom_call.1} parent=5 // pred_check
        %p133 = pneg %p132
      $region18: #{tpu_custom_call.1} parent=5 // pred_check_branch
        %135 = sbr.rel (%p133) target = $region20
      $region19: #{tpu_custom_call.1} parent=5 // pred_region
        // Predicated region
        $region21: #{tpu_custom_call.1} parent=19 // pred_check
          %p136 = pneg %p70
        $region22: #{tpu_custom_call.1} parent=19 // pred_check_branch
          %138 = sbr.rel (%p136) target = $region24
        $region23: #{tpu_custom_call.1} parent=19 // pred_region
          %s139 = sand.u32 %s60, 1
          %s140 = scalar_lea.sflag [#allocation6], %s139
          %s141 = sand.u32 %s60, 1
          %s142 = smul.addr %s141, 256
          %s143 = scalar_lea.vmem [#allocation5], %s142
          %s144 = smul.u32 64, %s23
          %s146 = ssub.s32 4096, 4096
          %147 = vsyncadd %s140, %s146
          %s148 = smul.addr %s22, 64
          %s149 = sadd.s32 %s144, %s148
          %s150 = smul.addr %s149, 64
          %s151 = scalar_lea.hbm %s1, %s150
          %s152 = sshll.u32 %s143, 4
          %s153 = int_to_ptr.vmem [resolvable:$true] %s152
          %158 = dma.hbm_to_vmem [thread:$0]  %s151, 4096, %s153, %s140, 64, 64, 4
        $region24: #{tpu_custom_call.1} parent=19 // pred_fallthru
          _
      $region20: #{tpu_custom_call.1} parent=5 // pred_fallthru
        _
      %p159 = scmp.le.s32.totalorder 1, %s15
      %p160 = scmp.lt.s32.totalorder %s15, 3
      %p161 = pnand %p159, %p160
      %p162 = pneg %p161
      // Predicated region
      $region25: #{tpu_custom_call.1} parent=5 // pred_check
        _
      $region26: #{tpu_custom_call.1} parent=5 // pred_check_branch
        %164 = sbr.rel (%p161) target = $region28
      $region27: #{tpu_custom_call.1} parent=5 // pred_region
        %s165 = ssub.s32 %s15, 1
        // Predicated region
        $region29: #{tpu_custom_call.1} parent=27 // pred_check
          %p166 = pneg %p48
        $region30: #{tpu_custom_call.1} parent=27 // pred_check_branch
          %168 = sbr.rel (%p166) target = $region32
        $region31: #{tpu_custom_call.1} parent=27 // pred_region
          %169 = dma.done [#allocation3], 128
        $region32: #{tpu_custom_call.1} parent=27 // pred_fallthru
          _
        %s170 = sand.u32 %s63, 1
        %s171 = scalar_lea.sflag [#allocation6], %s170
        %s172 = sand.u32 %s63, 1
        %s173 = smul.addr %s172, 256
        %s174 = scalar_lea.vmem [#allocation5], %s173
        // Predicated region
        $region33: #{tpu_custom_call.1} parent=27 // pred_check
          %p175 = pneg %p76
        $region34: #{tpu_custom_call.1} parent=27 // pred_check_branch
          %177 = sbr.rel (%p175) target = $region36
        $region35: #{tpu_custom_call.1} parent=27 // pred_region
          %178 = dma.done %s171, 4096
        $region36: #{tpu_custom_call.1} parent=27 // pred_fallthru
          _
        %p179 = pneg %p48
        %p180 = pneg %p45
        %s181 = sand.u32 %s63, 1
        %s182 = scalar_lea.sflag [#allocation6], %s181
        %s183 = sand.u32 %s63, 1
        %s184 = smul.addr %s183, 256
        %s185 = scalar_lea.vmem [#allocation5], %s184
        %p186 = pneg %p76
        %p187 = pneg %p73
        %p188 = pneg %p104
        %p189 = pneg %p101
        %s190 = sand.u32 %s91, 1
        %s191 = scalar_lea.sflag [#allocation4], %s190
        %s192 = sand.u32 %s91, 1
        %s193 = smul.addr %s192, 64
        %s194 = scalar_lea.vmem [#allocation7], %s193
        %s195 = smul.u32 64, %s25
        %s196 = smul.u32 4, %s25
        %v198 = vld [vmem:[#allocation2] sm:$0xf]
        %v199 = vld [vmem:[#allocation2 + $0x4] sm:$0xf]
        %v200 = vld [vmem:[%s174] sm:$0xf]
        %v201 = vld [vmem:[%s174 + $0x4] sm:$0xf]
        %v202 = vld [vmem:[%s174 + $0x8] sm:$0xf]
        %v203 = vld [vmem:[%s174 + $0xc] sm:$0xf]
        %v204 = vld [vmem:[%s174 + $0x10] sm:$0xf]
        %v205 = vld [vmem:[%s174 + $0x14] sm:$0xf]
        %v206 = vld [vmem:[%s174 + $0x18] sm:$0xf]
        %v207 = vld [vmem:[%s174 + $0x1c] sm:$0xf]
        %v208 = vld [vmem:[%s174 + $0x20] sm:$0xf]
        %v209 = vld [vmem:[%s174 + $0x24] sm:$0xf]
        %v210 = vld [vmem:[%s174 + $0x28] sm:$0xf]
        %v211 = vld [vmem:[%s174 + $0x2c] sm:$0xf]
        %v212 = vld [vmem:[%s174 + $0x30] sm:$0xf]
        %v213 = vld [vmem:[%s174 + $0x34] sm:$0xf]
        %v214 = vld [vmem:[%s174 + $0x38] sm:$0xf]
        %v215 = vld [vmem:[%s174 + $0x3c] sm:$0xf]
        %v216 = vld [vmem:[%s174 + $0x40] sm:$0xf]
        %v217 = vld [vmem:[%s174 + $0x44] sm:$0xf]
        %v218 = vld [vmem:[%s174 + $0x48] sm:$0xf]
        %v219 = vld [vmem:[%s174 + $0x4c] sm:$0xf]
        %v220 = vld [vmem:[%s174 + $0x50] sm:$0xf]
        %v221 = vld [vmem:[%s174 + $0x54] sm:$0xf]
        %v222 = vld [vmem:[%s174 + $0x58] sm:$0xf]
        %v223 = vld [vmem:[%s174 + $0x5c] sm:$0xf]
        %v224 = vld [vmem:[%s174 + $0x60] sm:$0xf]
        %v225 = vld [vmem:[%s174 + $0x64] sm:$0xf]
        %v226 = vld [vmem:[%s174 + $0x68] sm:$0xf]
        %v227 = vld [vmem:[%s174 + $0x6c] sm:$0xf]
        %v228 = vld [vmem:[%s174 + $0x70] sm:$0xf]
        %v229 = vld [vmem:[%s174 + $0x74] sm:$0xf]
        %v230 = vld [vmem:[%s174 + $0x78] sm:$0xf]
        %v231 = vld [vmem:[%s174 + $0x7c] sm:$0xf]
        %v232 = vld [vmem:[%s174 + $0x80] sm:$0xf]
        %v233 = vld [vmem:[%s174 + $0x84] sm:$0xf]
        %v234 = vld [vmem:[%s174 + $0x88] sm:$0xf]
        %v235 = vld [vmem:[%s174 + $0x8c] sm:$0xf]
        %v236 = vld [vmem:[%s174 + $0x90] sm:$0xf]
        %v237 = vld [vmem:[%s174 + $0x94] sm:$0xf]
        %v238 = vld [vmem:[%s174 + $0x98] sm:$0xf]
        %v239 = vld [vmem:[%s174 + $0x9c] sm:$0xf]
        %v240 = vld [vmem:[%s174 + $0xa0] sm:$0xf]
        %v241 = vld [vmem:[%s174 + $0xa4] sm:$0xf]
        %v242 = vld [vmem:[%s174 + $0xa8] sm:$0xf]
        %v243 = vld [vmem:[%s174 + $0xac] sm:$0xf]
        %v244 = vld [vmem:[%s174 + $0xb0] sm:$0xf]
        %v245 = vld [vmem:[%s174 + $0xb4] sm:$0xf]
        %v246 = vld [vmem:[%s174 + $0xb8] sm:$0xf]
        %v247 = vld [vmem:[%s174 + $0xbc] sm:$0xf]
        %v248 = vld [vmem:[%s174 + $0xc0] sm:$0xf]
        %v249 = vld [vmem:[%s174 + $0xc4] sm:$0xf]
        %v250 = vld [vmem:[%s174 + $0xc8] sm:$0xf]
        %v251 = vld [vmem:[%s174 + $0xcc] sm:$0xf]
        %v252 = vld [vmem:[%s174 + $0xd0] sm:$0xf]
        %v253 = vld [vmem:[%s174 + $0xd4] sm:$0xf]
        %v254 = vld [vmem:[%s174 + $0xd8] sm:$0xf]
        %v255 = vld [vmem:[%s174 + $0xdc] sm:$0xf]
        %v256 = vld [vmem:[%s174 + $0xe0] sm:$0xf]
        %v257 = vld [vmem:[%s174 + $0xe4] sm:$0xf]
        %v258 = vld [vmem:[%s174 + $0xe8] sm:$0xf]
        %v259 = vld [vmem:[%s174 + $0xec] sm:$0xf]
        %v260 = vld [vmem:[%s174 + $0xf0] sm:$0xf]
        %v261 = vld [vmem:[%s174 + $0xf4] sm:$0xf]
        %v262 = vld [vmem:[%s174 + $0xf8] sm:$0xf]
        %v263 = vld [vmem:[%s174 + $0xfc] sm:$0xf]
        %v266 = vunpack.c.l.b16 %v198
        %v267 = vunpack.c.l.b16 %v199
        %v268 = vpack.c.b16 %v267, %v266
        %v334 = vunpack.c.l.b16 %v200
        %v335 = vunpack.c.l.b16 %v201
        %v336 = vunpack.c.l.b16 %v202
        %v337 = vunpack.c.l.b16 %v203
        %v338 = vunpack.c.l.b16 %v204
        %v339 = vunpack.c.l.b16 %v205
        %v340 = vunpack.c.l.b16 %v206
        %v341 = vunpack.c.l.b16 %v207
        %v342 = vunpack.c.l.b16 %v208
        %v343 = vunpack.c.l.b16 %v209
        %v344 = vunpack.c.l.b16 %v210
        %v345 = vunpack.c.l.b16 %v211
        %v346 = vunpack.c.l.b16 %v212
        %v347 = vunpack.c.l.b16 %v213
        %v348 = vunpack.c.l.b16 %v214
        %v349 = vunpack.c.l.b16 %v215
        %v350 = vunpack.c.l.b16 %v216
        %v351 = vunpack.c.l.b16 %v217
        %v352 = vunpack.c.l.b16 %v218
        %v353 = vunpack.c.l.b16 %v219
        %v354 = vunpack.c.l.b16 %v220
        %v355 = vunpack.c.l.b16 %v221
        %v356 = vunpack.c.l.b16 %v222
        %v357 = vunpack.c.l.b16 %v223
        %v358 = vunpack.c.l.b16 %v224
        %v359 = vunpack.c.l.b16 %v225
        %v360 = vunpack.c.l.b16 %v226
        %v361 = vunpack.c.l.b16 %v227
        %v362 = vunpack.c.l.b16 %v228
        %v363 = vunpack.c.l.b16 %v229
        %v364 = vunpack.c.l.b16 %v230
        %v365 = vunpack.c.l.b16 %v231
        %v366 = vunpack.c.l.b16 %v232
        %v367 = vunpack.c.l.b16 %v233
        %v368 = vunpack.c.l.b16 %v234
        %v369 = vunpack.c.l.b16 %v235
        %v370 = vunpack.c.l.b16 %v236
        %v371 = vunpack.c.l.b16 %v237
        %v372 = vunpack.c.l.b16 %v238
        %v373 = vunpack.c.l.b16 %v239
        %v374 = vunpack.c.l.b16 %v240
        %v375 = vunpack.c.l.b16 %v241
        %v376 = vunpack.c.l.b16 %v242
        %v377 = vunpack.c.l.b16 %v243
        %v378 = vunpack.c.l.b16 %v244
        %v379 = vunpack.c.l.b16 %v245
        %v380 = vunpack.c.l.b16 %v246
        %v381 = vunpack.c.l.b16 %v247
        %v382 = vunpack.c.l.b16 %v248
        %v383 = vunpack.c.l.b16 %v249
        %v384 = vunpack.c.l.b16 %v250
        %v385 = vunpack.c.l.b16 %v251
        %v386 = vunpack.c.l.b16 %v252
        %v387 = vunpack.c.l.b16 %v253
        %v388 = vunpack.c.l.b16 %v254
        %v389 = vunpack.c.l.b16 %v255
        %v390 = vunpack.c.l.b16 %v256
        %v391 = vunpack.c.l.b16 %v257
        %v392 = vunpack.c.l.b16 %v258
        %v393 = vunpack.c.l.b16 %v259
        %v394 = vunpack.c.l.b16 %v260
        %v395 = vunpack.c.l.b16 %v261
        %v396 = vunpack.c.l.b16 %v262
        %v397 = vunpack.c.l.b16 %v263
        %v398 = vpack.c.b16 %v335, %v334
        %v399 = vpack.c.b16 %v337, %v336
        %v400 = vpack.c.b16 %v339, %v338
        %v401 = vpack.c.b16 %v341, %v340
        %v402 = vpack.c.b16 %v343, %v342
        %v403 = vpack.c.b16 %v345, %v344
        %v404 = vpack.c.b16 %v347, %v346
        %v405 = vpack.c.b16 %v349, %v348
        %v406 = vpack.c.b16 %v351, %v350
        %v407 = vpack.c.b16 %v353, %v352
        %v408 = vpack.c.b16 %v355, %v354
        %v409 = vpack.c.b16 %v357, %v356
        %v410 = vpack.c.b16 %v359, %v358
        %v411 = vpack.c.b16 %v361, %v360
        %v412 = vpack.c.b16 %v363, %v362
        %v413 = vpack.c.b16 %v365, %v364
        %v414 = vpack.c.b16 %v367, %v366
        %v415 = vpack.c.b16 %v369, %v368
        %v416 = vpack.c.b16 %v371, %v370
        %v417 = vpack.c.b16 %v373, %v372
        %v418 = vpack.c.b16 %v375, %v374
        %v419 = vpack.c.b16 %v377, %v376
        %v420 = vpack.c.b16 %v379, %v378
        %v421 = vpack.c.b16 %v381, %v380
        %v422 = vpack.c.b16 %v383, %v382
        %v423 = vpack.c.b16 %v385, %v384
        %v424 = vpack.c.b16 %v387, %v386
        %v425 = vpack.c.b16 %v389, %v388
        %v426 = vpack.c.b16 %v391, %v390
        %v427 = vpack.c.b16 %v393, %v392
        %v428 = vpack.c.b16 %v395, %v394
        %v429 = vpack.c.b16 %v397, %v396
        %462 = vmatprep.subr.bf16.mxu0 0
        %463 = vmatpush1.bf16.xpose.msra.mxu0 %v398
        %464 = vmatprep.subr.bf16.mxu0 0
        %465 = vmatpush1.bf16.xpose.msra.mxu0 %v399
        %466 = vmatprep.subr.bf16.mxu0 0
        %467 = vmatpush1.bf16.xpose.msra.mxu0 %v400
        %468 = vmatprep.subr.bf16.mxu0 0
        %469 = vmatpush1.bf16.xpose.msra.mxu0 %v401
        %470 = vmatprep.subr.bf16.mxu0 0
        %471 = vmatpush1.bf16.xpose.msra.mxu0 %v402
        %472 = vmatprep.subr.bf16.mxu0 0
        %473 = vmatpush1.bf16.xpose.msra.mxu0 %v403
        %474 = vmatprep.subr.bf16.mxu0 0
        %475 = vmatpush1.bf16.xpose.msra.mxu0 %v404
        %476 = vmatprep.subr.bf16.mxu0 0
        %477 = vmatpush1.bf16.xpose.msra.mxu0 %v405
        %478 = vmatprep.subr.bf16.mxu0 0
        %479 = vmatpush1.bf16.xpose.msra.mxu0 %v406
        %480 = vmatprep.subr.bf16.mxu0 0
        %481 = vmatpush1.bf16.xpose.msra.mxu0 %v407
        %482 = vmatprep.subr.bf16.mxu0 0
        %483 = vmatpush1.bf16.xpose.msra.mxu0 %v408
        %484 = vmatprep.subr.bf16.mxu0 0
        %485 = vmatpush1.bf16.xpose.msra.mxu0 %v409
        %486 = vmatprep.subr.bf16.mxu0 0
        %487 = vmatpush1.bf16.xpose.msra.mxu0 %v410
        %488 = vmatprep.subr.bf16.mxu0 0
        %489 = vmatpush1.bf16.xpose.msra.mxu0 %v411
        %490 = vmatprep.subr.bf16.mxu0 0
        %491 = vmatpush1.bf16.xpose.msra.mxu0 %v412
        %492 = vmatprep.subr.bf16.mxu0 0
        %493 = vmatpush1.bf16.xpose.msra.mxu0 %v413
        %494 = vmatprep.mubr.bf16.mxu0 0
        %495 = vmatmul.mubr.bf16.gmra.mrb[0].mxu0 %v268
        %v496 = vpop.f32.mrb[0].mxu0
        %v497 = vadd.f32 0.0, %v496
        %v498 = vpop.f32.mrb[0].mxu0
        %v499 = vadd.f32 0.0, %v498
        %v500 = vpop.f32.mrb[0].mxu0
        %v501 = vadd.f32 0.0, %v500
        %v502 = vpop.f32.mrb[0].mxu0
        %v503 = vadd.f32 0.0, %v502
        %504 = vdwg.mxu0
        %505 = vmatprep.subr.bf16.mxu0 0
        %506 = vmatpush1.bf16.xpose.msra.mxu0 %v414
        %507 = vmatprep.subr.bf16.mxu0 0
        %508 = vmatpush1.bf16.xpose.msra.mxu0 %v415
        %509 = vmatprep.subr.bf16.mxu0 0
        %510 = vmatpush1.bf16.xpose.msra.mxu0 %v416
        %511 = vmatprep.subr.bf16.mxu0 0
        %512 = vmatpush1.bf16.xpose.msra.mxu0 %v417
        %513 = vmatprep.subr.bf16.mxu0 0
        %514 = vmatpush1.bf16.xpose.msra.mxu0 %v418
        %515 = vmatprep.subr.bf16.mxu0 0
        %516 = vmatpush1.bf16.xpose.msra.mxu0 %v419
        %517 = vmatprep.subr.bf16.mxu0 0
        %518 = vmatpush1.bf16.xpose.msra.mxu0 %v420
        %519 = vmatprep.subr.bf16.mxu0 0
        %520 = vmatpush1.bf16.xpose.msra.mxu0 %v421
        %521 = vmatprep.subr.bf16.mxu0 0
        %522 = vmatpush1.bf16.xpose.msra.mxu0 %v422
        %523 = vmatprep.subr.bf16.mxu0 0
        %524 = vmatpush1.bf16.xpose.msra.mxu0 %v423
        %525 = vmatprep.subr.bf16.mxu0 0
        %526 = vmatpush1.bf16.xpose.msra.mxu0 %v424
        %527 = vmatprep.subr.bf16.mxu0 0
        %528 = vmatpush1.bf16.xpose.msra.mxu0 %v425
        %529 = vmatprep.subr.bf16.mxu0 0
        %530 = vmatpush1.bf16.xpose.msra.mxu0 %v426
        %531 = vmatprep.subr.bf16.mxu0 0
        %532 = vmatpush1.bf16.xpose.msra.mxu0 %v427
        %533 = vmatprep.subr.bf16.mxu0 0
        %534 = vmatpush1.bf16.xpose.msra.mxu0 %v428
        %535 = vmatprep.subr.bf16.mxu0 0
        %536 = vmatpush1.bf16.xpose.msra.mxu0 %v429
        %537 = vmatprep.mubr.bf16.mxu0 0
        %538 = vmatmul.mubr.bf16.gmra.mrb[0].mxu0 %v268
        %v539 = vpop.f32.mrb[0].mxu0
        %v540 = vadd.f32 0.0, %v539
        %v541 = vpop.f32.mrb[0].mxu0
        %v542 = vadd.f32 0.0, %v541
        %v543 = vpop.f32.mrb[0].mxu0
        %v544 = vadd.f32 0.0, %v543
        %v545 = vpop.f32.mrb[0].mxu0
        %v546 = vadd.f32 0.0, %v545
        %547 = vdwg.mxu0
        %v548 = vmul.f32 %v497, 14.285714
        %v549 = vmul.f32 %v499, 14.285714
        %v550 = vmul.f32 %v540, 14.285714
        %v551 = vmul.f32 %v542, 14.285714
        %v552 = vmul.f32 %v501, 14.285714
        %v553 = vmul.f32 %v503, 14.285714
        %v554 = vmul.f32 %v544, 14.285714
        %v555 = vmul.f32 %v546, 14.285714
        %556 = vst [vmem:[%s194] sm:$0xff] %v548
        %557 = vst [vmem:[%s194 + $0x8] sm:$0xff] %v549
        %558 = vst [vmem:[%s194 + $0x10] sm:$0xff] %v550
        %559 = vst [vmem:[%s194 + $0x18] sm:$0xff] %v551
        %560 = vst [vmem:[%s194 + $0x20] sm:$0xff] %v552
        %561 = vst [vmem:[%s194 + $0x28] sm:$0xff] %v553
        %562 = vst [vmem:[%s194 + $0x30] sm:$0xff] %v554
        %563 = vst [vmem:[%s194 + $0x38] sm:$0xff] %v555
        %s564 = sand.u32 %s91, 1
        %s565 = scalar_lea.sflag [#allocation4], %s564
        %s566 = sand.u32 %s91, 1
        %s567 = smul.addr %s566, 64
        %s568 = scalar_lea.vmem [#allocation7], %s567
        // Predicated region
        $region37: #{tpu_custom_call.1} parent=27 // pred_check
          %p569 = pneg %p101
        $region38: #{tpu_custom_call.1} parent=27 // pred_check_branch
          %571 = sbr.rel (%p569) target = $region40
        $region39: #{tpu_custom_call.1} parent=27 // pred_region
          %s572 = smul.u32 4, %s25
          %s574 = ssub.s32 1024, 1024
          %575 = vsyncadd %s565, %s574
          %s576 = smul.addr %s24, 8
          %s577 = sadd.s32 %s572, %s576
          %s578 = smul.addr %s577, 128
          %s579 = scalar_lea.hbm %s2, %s578
          %s580 = sshll.u32 %s568, 4
          %s581 = int_to_ptr.vmem [resolvable:$true] %s580
          %586 = dma.vmem_to_hbm [thread:$0]  %s581, 1024, %s579, %s565, 512, 512, 32
        $region40: #{tpu_custom_call.1} parent=27 // pred_fallthru
          _
      $region28: #{tpu_custom_call.1} parent=5 // pred_fallthru
        _
      %p587 = scmp.le.s32.totalorder 2, %s15
      // Predicated region
      $region41: #{tpu_custom_call.1} parent=5 // pred_check
        %p588 = pneg %p587
      $region42: #{tpu_custom_call.1} parent=5 // pred_check_branch
        %590 = sbr.rel (%p588) target = $region44
      $region43: #{tpu_custom_call.1} parent=5 // pred_region
        %s591 = ssub.s32 %s15, 2
        // Predicated region
        $region45: #{tpu_custom_call.1} parent=43 // pred_check
          %p592 = pneg %p107
        $region46: #{tpu_custom_call.1} parent=43 // pred_check_branch
          %594 = sbr.rel (%p592) target = $region48
        $region47: #{tpu_custom_call.1} parent=43 // pred_region
          %s595 = sand.u32 %s92, 1
          %s596 = scalar_lea.sflag [#allocation4], %s595
          %s597 = sand.u32 %s92, 1
          %s598 = smul.addr %s597, 64
          %s599 = scalar_lea.vmem [#allocation7], %s598
          %600 = dma.done %s596, 1024
        $region48: #{tpu_custom_call.1} parent=43 // pred_fallthru
          _
      $region44: #{tpu_custom_call.1} parent=5 // pred_fallthru
        _
    $region6: #{tpu_custom_call.1} parent=1 // loop_footer
      %s19 = sadd.s32 1, %s15
    $region7: #{tpu_custom_call.1} parent=1 // loop_footer_branch
      %14 = sbr.rel target = $region3
    $region8: #{tpu_custom_call.1} parent=1 // loop_exit
      _
    %601 = vsyncpa [#allocation3], 1
    %s602 = scalar_lea.sflag [#allocation3], 1
    %603 = vsyncpa %s602, 1
    %604 = vsyncpa [#allocation6], 1
    %s605 = scalar_lea.sflag [#allocation6], 1
    %606 = vsyncpa %s605, 1
    %607 = vsyncpa [#allocation4], 1
    %s608 = scalar_lea.sflag [#allocation4], 1
    %609 = vsyncpa %s608, 1

</llo_original>
